<compile_context>
chip_gen: v5e
topology: v5e:2x2
jax: 0.10.0
libtpu: 0.0.40
codegen_flags: <defaults>
</compile_context>

<pallas_src>
import functools

import jax
import jax.numpy as jnp
from jax.experimental import pallas as pl
from jax.experimental.pallas import tpu as pltpu


def _round_up(x: int, m: int) -> int:
    return ((x + m - 1) // m) * m


def _choose_block_rows(B: int, N: int) -> int:
    """Rows per grid block.

    Biggest tile that fits a conservative per-tile VMEM budget (safe on v7x's
    64 MiB physical VMEM once double-buffering and f32 temporaries are counted),
    split >= 2 ways (even block count) for moderate/large batches so the v7x
    megacore 'parallel' axis gets balanced real work on both TensorCores.
    """
    tile_budget = 1 * 1024 * 1024                      # ~1 MiB f32 per tile
    max_rows = max(8, (tile_budget // (N * 4)) // 8 * 8)
    if B <= 8:
        return B                                       # block dim == full array dim
    g = pl.cdiv(B, max_rows)
    if g < 2 and B >= 512:
        g = 2                                          # balance two TCs on v7x
    if g > 1 and g % 2:
        g += 1                                         # even block count for megacore
    tb = _round_up(pl.cdiv(B, g), 8)
    # Never let the block exceed the array: only standard partial *last* blocks.
    tb = min(tb, (B // 8) * 8)
    return max(tb, 8)


def _lsq_scaled_kernel(pred_ref, label_ref, scaled_ref, partial_ref, *, tb, batch):
    """One (tb, N)-row block of the batch.

    pred_ref / label_ref : (tb, N) input tiles
    scaled_ref           : (tb, N) scaled prediction output tile
    partial_ref          : (1, 8, 128) per-block partial SSE (scalar at [0,0,0])
    """
    i = pl.program_id(0)

    p = pred_ref[...].astype(jnp.float32)    # (tb, N)
    g = label_ref[...].astype(jnp.float32)   # (tb, N)

    # Per-batch-row least-squares optimal scale: <p, g> / <p, p>.
    dot_pp = jnp.sum(p * p, axis=1, keepdims=True)    # (tb, 1)
    dot_pg = jnp.sum(p * g, axis=1, keepdims=True)    # (tb, 1)
    s_opt = dot_pg / dot_pp   # exact divide; NaN for all-zero rows (matches torch)

    scaled = s_opt * p                                 # (tb, N)
    scaled_ref[...] = scaled.astype(scaled_ref.dtype)

    # Sum of squared errors for this block; rows beyond the real batch (partial
    # last block reads undefined data) are masked out.
    diff = scaled - g
    row_sse = jnp.sum(diff * diff, axis=1, keepdims=True)              # (tb, 1)
    row_idx = i * tb + jax.lax.broadcasted_iota(jnp.int32, (tb, 1), 0)
    valid = row_idx < batch
    partial = jnp.sum(jnp.where(valid, row_sse, 0.0))

    # Write the scalar partial only to element [0,0,0]; zeros elsewhere.
    sub = jax.lax.broadcasted_iota(jnp.int32, partial_ref.shape, 1)
    lane = jax.lax.broadcasted_iota(jnp.int32, partial_ref.shape, 2)
    partial_ref[...] = jnp.where((sub == 0) & (lane == 0), partial, 0.0)


def _fused_small(pred, label):
    """Fused XLA fast path for tiny problems (kernel launch overhead dominates)."""
    B = pred.shape[0]
    pv = pred.reshape(B, -1).astype(jnp.float32)
    gv = label.reshape(B, -1).astype(jnp.float32)
    dot_pp = jnp.sum(pv * pv, axis=1, keepdims=True)
    dot_pg = jnp.sum(pv * gv, axis=1, keepdims=True)
    s_opt = dot_pg / dot_pp
    scaled = s_opt * pv
    loss = jnp.mean((scaled - gv) ** 2)
    return loss, scaled.reshape(pred.shape).astype(pred.dtype)


def criterion3dpose_least_squares_scaled(pred, label, *, force_pallas=False):
    """pred, label: (B, J, 3). Returns (MSE loss scalar, scaled_pred (B, J, 3))."""
    B = pred.shape[0]
    pred_vec = pred.reshape(B, -1)     # free contiguous reshape
    label_vec = label.reshape(B, -1)
    N = pred_vec.shape[1]

    # Small-problem fast path: below ~16K elements the pallas_call fixed cost
    # exceeds the streaming cost of a single fused XLA expression.
    if not force_pallas and B * N <= 16 * 1024:
        return _fused_small(pred, label)

    TB = _choose_block_rows(B, N)
    G = pl.cdiv(B, TB)

    kernel = functools.partial(_lsq_scaled_kernel, tb=TB, batch=B)

    scaled, partials = pl.pallas_call(
        kernel,
        out_shape=(
            jax.ShapeDtypeStruct((B, N), pred.dtype),
            jax.ShapeDtypeStruct((G, 8, 128), jnp.float32),
        ),
        grid_spec=pltpu.PrefetchScalarGridSpec(
            num_scalar_prefetch=0,
            grid=(G,),
            in_specs=[
                pl.BlockSpec((TB, N), lambda i: (i, 0)),
                pl.BlockSpec((TB, N), lambda i: (i, 0)),
            ],
            out_specs=(
                pl.BlockSpec((TB, N), lambda i: (i, 0)),
                pl.BlockSpec((1, 8, 128), lambda i: (i, 0, 0)),
            ),
        ),
        compiler_params=pltpu.CompilerParams(
            dimension_semantics=("parallel",),
            vmem_limit_bytes=32 * 1024 * 1024,
        ),
    )(pred_vec, label_vec)

    # MSELoss(reduction='mean'): SSE over real elements / true element count.
    loss = jnp.sum(partials) / (B * N)
    return loss, scaled.reshape(pred.shape)


def _reference(pred, label):
    B = pred.shape[0]
    pv = pred.reshape(B, -1).astype(jnp.float32)
    gv = label.reshape(B, -1).astype(jnp.float32)
    s = jnp.sum(pv * gv, axis=1, keepdims=True) / jnp.sum(pv * pv, axis=1, keepdims=True)
    scaled = s[..., None] * pred.astype(jnp.float32)
    loss = jnp.mean((scaled - label.astype(jnp.float32)) ** 2)
    return loss, scaled


if __name__ == "__main__":
    key = jax.random.PRNGKey(0)
    k1, k2, k3, k4 = jax.random.split(key, 4)

    # Primary small case (B=2, J=16 joints, xyz) — force the Pallas kernel path.
    B, J, D = 2, 16, 3
    pred = jax.random.normal(k1, (B, J, D), dtype=jnp.float32)
    label = jax.random.normal(k2, (B, J, D), dtype=jnp.float32)

    loss, scaled_pred = criterion3dpose_least_squares_scaled(pred, label, force_pallas=True)
    jax.block_until_ready((loss, scaled_pred))

    ref_loss, ref_scaled = _reference(pred, label)
    assert jnp.allclose(loss, ref_loss, rtol=1e-5, atol=1e-5)
    assert jnp.allclose(scaled_pred, ref_scaled, rtol=1e-5, atol=1e-5)

    # Small case through the default (fused fast-path) entry point.
    loss_fp, scaled_fp = criterion3dpose_least_squares_scaled(pred, label)
    jax.block_until_ready((loss_fp, scaled_fp))
    assert jnp.allclose(loss_fp, ref_loss, rtol=1e-5, atol=1e-5)
    assert jnp.allclose(scaled_fp, ref_scaled, rtol=1e-5, atol=1e-5)

    # Multi-block case exercising the batch grid, two balanced blocks (TB=264),
    # the partial last block and the in-kernel row mask.
    B2 = 520
    pred2 = jax.random.normal(k3, (B2, J, D), dtype=jnp.float32)
    label2 = jax.random.normal(k4, (B2, J, D), dtype=jnp.float32)

    loss2, scaled2 = criterion3dpose_least_squares_scaled(pred2, label2)
    jax.block_until_ready((loss2, scaled2))

    ref_loss2, ref_scaled2 = _reference(pred2, label2)
    assert jnp.allclose(loss2, ref_loss2, rtol=1e-4, atol=1e-6)
    assert jnp.allclose(scaled2, ref_scaled2, rtol=1e-4, atol=1e-5)

    print("KERNEL_OK")
</pallas_src>

<mosaic_0001>
module attributes {stable_mosaic.version = 11 : i64} {
  func.func @_lsq_scaled_kernel(%arg0: i32, %arg1: memref<2x48xf32, #tpu.memory_space<vmem>>, %arg2: memref<2x48xf32, #tpu.memory_space<vmem>>, %arg3: memref<2x48xf32, #tpu.memory_space<vmem>>, %arg4: memref<1x8x128xf32, #tpu.memory_space<vmem>>) attributes {dimension_semantics = [#tpu.dimension_semantics<parallel>], iteration_bounds = array<i64: 1>, scalar_prefetch = 0 : i64, scratch_operands = 0 : i64, tpu.core_type = #tpu.core_type<tc>, window_params = [{transform_indices = @transform_0, window_bounds = array<i64: 2, 48>}, {transform_indices = @transform_1, window_bounds = array<i64: 2, 48>}, {transform_indices = @transform_2, window_bounds = array<i64: 2, 48>}, {transform_indices = @transform_3, window_bounds = array<i64: 1, 8, 128>}]} {
    %c0 = arith.constant 0 : index
    %c0_0 = arith.constant 0 : index
    %0 = vector.load %arg1[%c0, %c0_0] : memref<2x48xf32, #tpu.memory_space<vmem>>, vector<2x48xf32>
    %c0_1 = arith.constant 0 : index
    %c0_2 = arith.constant 0 : index
    %1 = vector.load %arg2[%c0_1, %c0_2] : memref<2x48xf32, #tpu.memory_space<vmem>>, vector<2x48xf32>
    %2 = arith.mulf %0, %0 : vector<2x48xf32>
    %cst = arith.constant dense<0.000000e+00> : vector<2xf32>
    %3 = vector.multi_reduction <add>, %2, %cst [1] : vector<2x48xf32> to vector<2xf32>
    %4 = vector.shape_cast %3 : vector<2xf32> to vector<2x1xf32>
    %5 = arith.mulf %0, %1 : vector<2x48xf32>
    %cst_3 = arith.constant dense<0.000000e+00> : vector<2xf32>
    %6 = vector.multi_reduction <add>, %5, %cst_3 [1] : vector<2x48xf32> to vector<2xf32>
    %7 = vector.shape_cast %6 : vector<2xf32> to vector<2x1xf32>
    %8 = arith.divf %7, %4 : vector<2x1xf32>
    %9 = vector.broadcast %8 : vector<2x1xf32> to vector<2x48xf32>
    %10 = arith.mulf %9, %0 : vector<2x48xf32>
    %c0_4 = arith.constant 0 : index
    %c0_5 = arith.constant 0 : index
    %11 = vector.load %arg3[%c0_4, %c0_5] : memref<2x48xf32, #tpu.memory_space<vmem>>, vector<2x48xf32>
    tpu.vector_store %arg3[%c0_4, %c0_5], %10 {strides = array<i32>} : memref<2x48xf32, #tpu.memory_space<vmem>>, vector<2x48xf32>,
    %12 = arith.subf %10, %1 : vector<2x48xf32>
    %13 = arith.mulf %12, %12 : vector<2x48xf32>
    %cst_6 = arith.constant dense<0.000000e+00> : vector<2xf32>
    %14 = vector.multi_reduction <add>, %13, %cst_6 [1] : vector<2x48xf32> to vector<2xf32>
    %15 = vector.shape_cast %14 : vector<2xf32> to vector<2x1xf32>
    %c2_i32 = arith.constant 2 : i32
    %16 = arith.muli %arg0, %c2_i32 : i32
    %17 = tpu.iota {dimensions = array<i32: 0>} : vector<2x1xi32>
    %18 = vector.broadcast %16 : i32 to vector<2x1xi32>
    %19 = arith.addi %18, %17 : vector<2x1xi32>
    %c2_i32_7 = arith.constant 2 : i32
    %20 = vector.broadcast %c2_i32_7 : i32 to vector<2x1xi32>
    %21 = arith.cmpi slt, %19, %20 : vector<2x1xi32>
    %cst_8 = arith.constant 0.000000e+00 : f32
    %22 = vector.broadcast %cst_8 : f32 to vector<2x1xf32>
    %23 = arith.select %21, %15, %22 : vector<2x1xi1>, vector<2x1xf32>
    %24 = vector.shape_cast %23 : vector<2x1xf32> to vector<1x2x1xf32>
    %cst_9 = arith.constant dense<0.000000e+00> : vector<1xf32>
    %25 = vector.multi_reduction <add>, %24, %cst_9 [1, 2] : vector<1x2x1xf32> to vector<1xf32>
    %26 = vector.shape_cast %25 : vector<1xf32> to vector<1x1x1xf32>
    %27 = vector.extract %26[0, 0, 0] : f32 from vector<1x1x1xf32>
    %28 = tpu.iota {dimensions = array<i32: 1>} : vector<1x8x128xi32>
    %29 = tpu.iota {dimensions = array<i32: 2>} : vector<1x8x128xi32>
    %c0_i32 = arith.constant 0 : i32
    %30 = vector.broadcast %c0_i32 : i32 to vector<1x8x128xi32>
    %31 = arith.cmpi eq, %28, %30 : vector<1x8x128xi32>
    %c0_i32_10 = arith.constant 0 : i32
    %32 = vector.broadcast %c0_i32_10 : i32 to vector<1x8x128xi32>
    %33 = arith.cmpi eq, %29, %32 : vector<1x8x128xi32>
    %34 = arith.andi %31, %33 : vector<1x8x128xi1>
    %cst_11 = arith.constant 0.000000e+00 : f32
    %35 = vector.broadcast %27 : f32 to vector<1x8x128xf32>
    %36 = vector.broadcast %cst_11 : f32 to vector<1x8x128xf32>
    %37 = arith.select %34, %35, %36 : vector<1x8x128xi1>, vector<1x8x128xf32>
    %c0_12 = arith.constant 0 : index
    %c0_13 = arith.constant 0 : index
    %c0_14 = arith.constant 0 : index
    %38 = vector.load %arg4[%c0_12, %c0_13, %c0_14] : memref<1x8x128xf32, #tpu.memory_space<vmem>>, vector<1x8x128xf32>
    tpu.vector_store %arg4[%c0_12, %c0_13, %c0_14], %37 {strides = array<i32>} : memref<1x8x128xf32, #tpu.memory_space<vmem>>, vector<1x8x128xf32>,
    return
  }
  func.func @transform_0(%arg0: i32) -> (i32, i32) {
    %c0_i32 = arith.constant 0 : i32
    %c0_i32_0 = arith.constant 0 : i32
    return %arg0, %c0_i32 : i32, i32
  }
  func.func @transform_1(%arg0: i32) -> (i32, i32) {
    %c0_i32 = arith.constant 0 : i32
    %c0_i32_0 = arith.constant 0 : i32
    return %arg0, %c0_i32 : i32, i32
  }
  func.func @transform_2(%arg0: i32) -> (i32, i32) {
    %c0_i32 = arith.constant 0 : i32
    %c0_i32_0 = arith.constant 0 : i32
    return %arg0, %c0_i32 : i32, i32
  }
  func.func @transform_3(%arg0: i32) -> (i32, i32, i32) {
    %c0_i32 = arith.constant 0 : i32
    %c0_i32_0 = arith.constant 0 : i32
    %c0_i32_1 = arith.constant 0 : i32
    return %arg0, %c0_i32, %c0_i32_0 : i32, i32, i32
  }
}

</mosaic_0001>

<llo_original>
// kernel: tpu_custom_call.1
$region0: #{tpu_custom_call.1}
  #allocation0 [shape = 'u32[]', space=smem, size = 0x4, offset = 0x4, fixed_abs, tag = 'smem constant byte address 0x4 - core index']
  #allocation1 [shape = 'u32[72,128]{1,0:T(1,128)}', space=vmem, size = 0x9000, scoped, tag = 'internal scratch']
  %s0 = inlined_call_operand.hbm [shape: f32[2,48], index: 0, kind: input, shape index: {}]
  %s1 = inlined_call_operand.hbm [shape: f32[2,48], index: 1, kind: input, shape index: {}]
  %s2 = inlined_call_operand.hbm [shape: f32[2,48], index: 2, kind: output, shape index: {0}]
  %s3 = inlined_call_operand.hbm [shape: f32[1,8,128], index: 3, kind: output, shape index: {1}]
  %4 = xla_tuple %s2, %s3
  %s5 = sld [smem:[#allocation0]]
  $region34: #{tpu_custom_call.1} parent=0
    _
  %s7 = ssub.s32 1, %s5
  %s8 = scalar_select 0, %s7, %s5
  $region1: #{tpu_custom_call.1} parent=0
    #allocation2 [shape = 'u8[1024]{0}', space=vmem, size = 0x400, scoped, tag = 'input window, operand 0, single buffered']
    #allocation3 [shape = 's32[1]{0}', space=sflag, size = 0x4, scoped, tag = 'scoped memory for tpu_custom_call.1']
    #allocation4 [shape = 's32[1]{0}', space=sflag, size = 0x4, scoped, tag = 'scoped memory for tpu_custom_call.1']
    #allocation5 [shape = 'u8[1024]{0}', space=vmem, size = 0x400, scoped, tag = 'input window, operand 1, single buffered']
    #allocation6 [shape = 's32[1]{0}', space=sflag, size = 0x4, scoped, tag = 'scoped memory for tpu_custom_call.1']
    #allocation7 [shape = 'u8[1024]{0}', space=vmem, size = 0x400, scoped, tag = 'output window, operand 0, single buffered']
    #allocation8 [shape = 'u8[4096]{0}', space=vmem, size = 0x1000, scoped, tag = 'output window, operand 1, single buffered']
    #allocation9 [shape = 's32[1]{0}', space=sflag, size = 0x4, scoped, tag = 'scoped memory for tpu_custom_call.1']
    %9 = vsyncpa [#allocation3], 0
    %10 = vsyncpa [#allocation6], 0
    %11 = vsyncpa [#allocation4], 0
    %12 = vsyncpa [#allocation9], 0
    // Predicated region
    $region2: #{tpu_custom_call.1} parent=1 // pred_check
      _
    $region3: #{tpu_custom_call.1} parent=1 // pred_check_branch
      %14 = sbr.rel (0) target = $region5
    $region4: #{tpu_custom_call.1} parent=1 // pred_region
      %16 = vsyncadd [#allocation3], 0
      %s18 = sshll.u32 %s0, 4
      %s19 = int_to_ptr.hbm [resolvable:$true] %s18
      %s20 = sshll.u32 [#allocation2], 4
      %s21 = int_to_ptr.vmem [resolvable:$true] %s20
      %23 = dma.hbm_to_vmem [thread:$0]  %s19, 32, %s21, [#allocation3]
    $region5: #{tpu_custom_call.1} parent=1 // pred_fallthru
      _
    // Predicated region
    $region6: #{tpu_custom_call.1} parent=1 // pred_check
      _
    $region7: #{tpu_custom_call.1} parent=1 // pred_check_branch
      %25 = sbr.rel (0) target = $region9
    $region8: #{tpu_custom_call.1} parent=1 // pred_region
      %27 = vsyncadd [#allocation6], 0
      %s29 = sshll.u32 %s1, 4
      %s30 = int_to_ptr.hbm [resolvable:$true] %s29
      %s31 = sshll.u32 [#allocation5], 4
      %s32 = int_to_ptr.vmem [resolvable:$true] %s31
      %34 = dma.hbm_to_vmem [thread:$0]  %s30, 32, %s32, [#allocation6]
    $region9: #{tpu_custom_call.1} parent=1 // pred_fallthru
      _
    // Predicated region
    $region10: #{tpu_custom_call.1} parent=1 // pred_check
      _
    $region11: #{tpu_custom_call.1} parent=1 // pred_check_branch
      %36 = sbr.rel (0) target = $region13
    $region12: #{tpu_custom_call.1} parent=1 // pred_region
      %38 = dma.done [#allocation3], 32
    $region13: #{tpu_custom_call.1} parent=1 // pred_fallthru
      _
    // Predicated region
    $region14: #{tpu_custom_call.1} parent=1 // pred_check
      _
    $region15: #{tpu_custom_call.1} parent=1 // pred_check_branch
      %40 = sbr.rel (0) target = $region17
    $region16: #{tpu_custom_call.1} parent=1 // pred_region
      %42 = dma.done [#allocation6], 32
    $region17: #{tpu_custom_call.1} parent=1 // pred_fallthru
      _
    %v43 = vld [vmem:[#allocation2] sm:$0x3]
    %v44 = vld [vmem:[#allocation5] sm:$0x3]
    %v45 = vmul.f32 %v43, %v43
    %vm46 = vcmask 386048
    %v47 = vsel %vm46, %v45, 0.0
    %48 = vadd.xlane.f32.xlu0 %v47
    %v49 = vpop.xlane.xlu0 %48
    %v50 = vmul.f32 %v43, %v44
    %v51 = vsel %vm46, %v50, 0.0
    %52 = vadd.xlane.f32.xlu0 %v51
    %v53 = vpop.xlane.xlu0 %52
    %v54 = vrcp.pop %v49
    %v55 = vmul.f32 %v49, %v54
    %v56 = vsub.f32 1.0, %v55
    %v57 = vmul.f32 %v54, %v56
    %v58 = vadd.f32 %v54, %v57
    %vm59 = vweird.f32 %v49
    %vm60 = vweird.f32 %v54
    %vm61 = vmor %vm59, %vm60
    %v62 = vsel %vm61, %v54, %v58
    %v63 = vand.u32 2147483647, %v49
    %vm64 = vcmp.eq.f32.partialorder %v63, 8.507059e+37
    %v65 = vand.u32 %v49, 2147483648
    %v66 = vor.u32 1.1754944e-38, %v65
    %v67 = vsel %vm64, %v66, %v62
    %v68 = vmul.f32 %v53, %v67
    %v69 = vmul.f32 %v68, %v43
    %70 = vst.msk [vmem:[#allocation7] sm:$0x3] %vm46, %v69
    %v71 = vsub.f32 %v69, %v44
    %v72 = vmul.f32 %v71, %v71
    %v73 = vsel %vm46, %v72, 0.0
    %74 = vadd.xlane.f32.xlu0 %v73
    %v75 = vpop.xlane.xlu0 %74
    %s76 = smul.u32 0, 2
    %v77 = vlaneseq
    %v78 = vshrl.u32 %v77, 7
    %v79 = vstv %s76
    %v80 = vadd.s32 %v79, %v78
    %vm81 = vcmp.lt.s32.totalorder %v80, 2
    %v82 = vsel %vm81, %v75, 0.0
    %vm83 = vcmask 1024
    %v84 = vsel %vm83, %v82, 0.0
    %85 = vadd.xlane.f32.xlu0 %v84
    %v86 = vpop.xlane.xlu0 %85
    %v87 = vrot.slane %v86, 4
    %v88 = vadd.f32 %v86, %v87
    %v89 = vrot.slane %v88, 2
    %v90 = vadd.f32 %v88, %v89
    %v91 = vrot.slane %v90, 1
    %v92 = vadd.f32 %v90, %v91
    %s93 = vtos %v92
    %v94 = vlaneseq
    %v95 = vand.u32 %v94, 127
    %vm96 = vcmp.eq.s32.totalorder %v78, 0
    %vm97 = vcmp.eq.s32.totalorder %v95, 0
    %vm98 = vmand %vm96, %vm97
    %v99 = vstv %s93
    %v100 = vsel %vm98, %v99, 0.0
    %101 = vst [vmem:[#allocation8] sm:$0xff] %v100
    // Predicated region
    $region18: #{tpu_custom_call.1} parent=1 // pred_check
      _
    $region19: #{tpu_custom_call.1} parent=1 // pred_check_branch
      %103 = sbr.rel (0) target = $region21
    $region20: #{tpu_custom_call.1} parent=1 // pred_region
      %105 = vsyncadd [#allocation4], 0
      %s107 = sshll.u32 [#allocation7], 4
      %s108 = int_to_ptr.vmem [resolvable:$true] %s107
      %s109 = sshll.u32 %s2, 4
      %s110 = int_to_ptr.hbm [resolvable:$true] %s109
      %112 = dma.vmem_to_hbm [thread:$0]  %s108, 32, %s110, [#allocation4]
    $region21: #{tpu_custom_call.1} parent=1 // pred_fallthru
      _
    // Predicated region
    $region22: #{tpu_custom_call.1} parent=1 // pred_check
      _
    $region23: #{tpu_custom_call.1} parent=1 // pred_check_branch
      %114 = sbr.rel (0) target = $region25
    $region24: #{tpu_custom_call.1} parent=1 // pred_region
      %116 = vsyncadd [#allocation9], 0
      %s118 = sshll.u32 [#allocation8], 4
      %s119 = int_to_ptr.vmem [resolvable:$true] %s118
      %s120 = sshll.u32 %s3, 4
      %s121 = int_to_ptr.hbm [resolvable:$true] %s120
      %123 = dma.vmem_to_hbm [thread:$0]  %s119, 128, %s121, [#allocation9]
    $region25: #{tpu_custom_call.1} parent=1 // pred_fallthru
      _
    // Predicated region
    $region26: #{tpu_custom_call.1} parent=1 // pred_check
      _
    $region27: #{tpu_custom_call.1} parent=1 // pred_check_branch
      %125 = sbr.rel (0) target = $region29
    $region28: #{tpu_custom_call.1} parent=1 // pred_region
      %127 = dma.done [#allocation4], 32
    $region29: #{tpu_custom_call.1} parent=1 // pred_fallthru
      _
    // Predicated region
    $region30: #{tpu_custom_call.1} parent=1 // pred_check
      _
    $region31: #{tpu_custom_call.1} parent=1 // pred_check_branch
      %129 = sbr.rel (0) target = $region33
    $region32: #{tpu_custom_call.1} parent=1 // pred_region
      %131 = dma.done [#allocation9], 128
    $region33: #{tpu_custom_call.1} parent=1 // pred_fallthru
      _
    %132 = vsyncpa [#allocation3], 1
    %133 = vsyncpa [#allocation6], 1
    %134 = vsyncpa [#allocation4], 1
    %135 = vsyncpa [#allocation9], 1

</llo_original>
